<compile_context>
chip_gen: v7x
topology: tpu7x:2x2x1
jax: 0.10.0
libtpu: 0.0.40
codegen_flags: <defaults>
</compile_context>

<pallas_src>
import jax
import jax.numpy as jnp
from jax.experimental import pallas as pl
from jax.experimental.pallas import tpu as pltpu


_LANES = 512                       # lane-dense last dim (multiple of 128)
_TARGET_TILE_BYTES = 2 * 1024 * 1024  # ~2 MiB per tile


def _elu_plus_one_kernel(x_ref, o_ref):
    """phi(x) = elu(x) + 1 = where(x > 0, x + 1, exp(x))."""
    x = x_ref[...]
    xf = x.astype(jnp.float32)
    # Clamp the exp argument so the discarded branch stays finite for large x
    # (jnp.where evaluates both branches).  Compute is free: EUP/VPU have huge
    # slack in a memory-bound kernel.
    y = jnp.where(xf > 0.0, xf + 1.0, jnp.exp(jnp.minimum(xf, 0.0)))
    o_ref[...] = y.astype(o_ref.dtype)


def _round_up(a, b):
    return ((a + b - 1) // b) * b


@jax.jit
def elu_feature_map(x):
    """Apply phi(x) = elu(x) + 1 elementwise via a Pallas TPU kernel.

    Works for any shape/dtype; returns an array of the same shape/dtype.
    """
    orig_shape = x.shape
    dtype = x.dtype
    n = x.size
    itemsize = jnp.dtype(dtype).itemsize

    # Sublane packing alignment for the second-to-last block dim.
    if itemsize == 1:
        row_align = 32
    elif itemsize == 2:
        row_align = 16
    else:
        row_align = 8

    rows_needed = pl.cdiv(n, _LANES)
    # VMEM-budgeted block: ~2 MiB per tile, rounded to the packing alignment.
    max_block_rows = max(
        row_align,
        (_TARGET_TILE_BYTES // (_LANES * itemsize)) // row_align * row_align,
    )
    block_rows = min(_round_up(rows_needed, row_align), max_block_rows)
    padded_rows = _round_up(rows_needed, block_rows)
    padded_n = padded_rows * _LANES

    flat = x.reshape(-1)
    if padded_n != n:
        flat = jnp.pad(flat, (0, padded_n - n))
    x2d = flat.reshape(padded_rows, _LANES)

    tile_bytes = block_rows * _LANES * itemsize
    # 2 live buffers per side (double buffering) + slack.
    vmem_limit = min(4 * int(tile_bytes) + (2 << 20), 64 * 1024 * 1024)

    out2d = pl.pallas_call(
        _elu_plus_one_kernel,
        out_shape=jax.ShapeDtypeStruct((padded_rows, _LANES), dtype),
        grid=(padded_rows // block_rows,),
        in_specs=[pl.BlockSpec((block_rows, _LANES), lambda i: (i, 0))],
        out_specs=pl.BlockSpec((block_rows, _LANES), lambda i: (i, 0)),
        compiler_params=pltpu.CompilerParams(
            dimension_semantics=("parallel",),
            vmem_limit_bytes=vmem_limit,
        ),
    )(x2d)

    out = out2d.reshape(-1)
    if padded_n != n:
        out = out[:n]
    return out.reshape(orig_shape)


class FeatureMap:
    """JAX mirror of the PyTorch FeatureMap interface."""

    def __init__(self, query_dims):
        self.query_dims = query_dims

    def new_feature_map(self, device=None):
        raise NotImplementedError()

    def forward_queries(self, x):
        return self(x)

    def forward_keys(self, x):
        return self(x)

    def forward(self, x):
        raise NotImplementedError()

    def __call__(self, x):
        return self.forward(x)

    @classmethod
    def factory(cls, *args, **kwargs):
        def inner(query_dims):
            return cls(query_dims, *args, **kwargs)
        return inner


class ActivationFunctionFeatureMap(FeatureMap):
    """A feature map that is simply an element-wise activation function."""

    def __init__(self, query_dims, activation_function):
        super().__init__(query_dims)
        self.activation_function = activation_function

    def new_feature_map(self, device=None):
        # Deterministic feature map: nothing to resample.
        return

    def forward(self, x):
        return self.activation_function(x)


# The feature map used by linmult's linear attention: phi(x) = elu(x) + 1.
elu_feature_map_factory = ActivationFunctionFeatureMap.factory(elu_feature_map)


if __name__ == "__main__":
    key = jax.random.PRNGKey(0)
    B, S, D = 2, 8, 32  # batch, seq, query_dims
    x = jax.random.normal(key, (B, S, D), dtype=jnp.float32)

    fmap = elu_feature_map_factory(query_dims=D)
    fmap.new_feature_map(None)

    q_feat = fmap.forward_queries(x)
    k_feat = fmap.forward_keys(x)
    jax.block_until_ready(q_feat)
    jax.block_until_ready(k_feat)

    # Reference check against plain-JAX elu(x) + 1.
    ref = jnp.where(x > 0.0, x + 1.0, jnp.exp(jnp.minimum(x, 0.0)))
    assert q_feat.shape == x.shape and q_feat.dtype == x.dtype
    assert jnp.allclose(q_feat, ref, atol=1e-6, rtol=1e-6)
    assert jnp.allclose(k_feat, ref, atol=1e-6, rtol=1e-6)

    # bf16 path (exercises the 16-row sublane alignment + f32 upcast compute).
    xb = jax.random.normal(jax.random.PRNGKey(1), (2, 16, 64), dtype=jnp.bfloat16)
    yb = fmap(xb)
    jax.block_until_ready(yb)
    xb32 = xb.astype(jnp.float32)
    refb = jnp.where(xb32 > 0.0, xb32 + 1.0,
                     jnp.exp(jnp.minimum(xb32, 0.0))).astype(jnp.bfloat16)
    assert yb.shape == xb.shape and yb.dtype == xb.dtype
    assert jnp.allclose(yb.astype(jnp.float32), refb.astype(jnp.float32),
                        atol=1e-2, rtol=1e-2)

    print("KERNEL_OK")
</pallas_src>

<mosaic_0001>
module attributes {stable_mosaic.version = 11 : i64} {
  func.func @_elu_plus_one_kernel(%arg0: i32, %arg1: memref<8x512xf32, #tpu.memory_space<vmem>>, %arg2: memref<8x512xf32, #tpu.memory_space<vmem>>) attributes {dimension_semantics = [#tpu.dimension_semantics<parallel>], iteration_bounds = array<i64: 1>, scalar_prefetch = 0 : i64, scratch_operands = 0 : i64, tpu.core_type = #tpu.core_type<tc>, window_params = [{transform_indices = @transform_0, window_bounds = array<i64: 8, 512>}, {transform_indices = @transform_1, window_bounds = array<i64: 8, 512>}]} {
    %c0 = arith.constant 0 : index
    %c0_0 = arith.constant 0 : index
    %0 = vector.load %arg1[%c0, %c0_0] : memref<8x512xf32, #tpu.memory_space<vmem>>, vector<8x512xf32>
    %cst = arith.constant 0.000000e+00 : f32
    %1 = vector.broadcast %cst : f32 to vector<8x512xf32>
    %2 = arith.cmpf ogt, %0, %1 : vector<8x512xf32>
    %cst_1 = arith.constant 1.000000e+00 : f32
    %3 = vector.broadcast %cst_1 : f32 to vector<8x512xf32>
    %4 = arith.addf %0, %3 : vector<8x512xf32>
    %cst_2 = arith.constant 0.000000e+00 : f32
    %5 = vector.broadcast %cst_2 : f32 to vector<8x512xf32>
    %6 = arith.minimumf %0, %5 : vector<8x512xf32>
    %7 = math.exp %6 : vector<8x512xf32>
    %8 = arith.select %2, %4, %7 : vector<8x512xi1>, vector<8x512xf32>
    %c0_3 = arith.constant 0 : index
    %c0_4 = arith.constant 0 : index
    %9 = vector.load %arg2[%c0_3, %c0_4] : memref<8x512xf32, #tpu.memory_space<vmem>>, vector<8x512xf32>
    tpu.vector_store %arg2[%c0_3, %c0_4], %8 {strides = array<i32>} : memref<8x512xf32, #tpu.memory_space<vmem>>, vector<8x512xf32>,
    return
  }
  func.func @transform_0(%arg0: i32) -> (i32, i32) {
    %c0_i32 = arith.constant 0 : i32
    %c0_i32_0 = arith.constant 0 : i32
    return %arg0, %c0_i32 : i32, i32
  }
  func.func @transform_1(%arg0: i32) -> (i32, i32) {
    %c0_i32 = arith.constant 0 : i32
    %c0_i32_0 = arith.constant 0 : i32
    return %arg0, %c0_i32 : i32, i32
  }
}

</mosaic_0001>

<llo_original>
// kernel: elu_feature_map.1
$region0: #{elu_feature_map.1}
  #allocation0 [shape = 'u32[]', space=smem, size = 0x4, offset = 0x4, fixed_abs, tag = 'smem constant byte address 0x4 - core index']
  #allocation1 [shape = 'u32[144,128]{1,0:T(1,128)}', space=vmem, size = 0x12000, scoped, tag = 'internal scratch']
  %s0 = inlined_call_operand.vmem [shape: f32[8,512], index: 0, kind: input, shape index: {}]
  %s1 = inlined_call_operand.vmem [shape: f32[8,512], index: 1, kind: output, shape index: {}]
  %s2 = sld [smem:[#allocation0]]
  $region14: #{elu_feature_map.1} parent=0
    _
  %s4 = ssub.s32 1, %s2
  %s5 = scalar_select 0, %s4, %s2
  // Predicated region
  $region2: #{elu_feature_map.1} parent=0 // pred_check
    _
  $region3: #{elu_feature_map.1} parent=0 // pred_check_branch
    %7 = sbr.rel (0) target = $region5
  $region4: #{elu_feature_map.1} parent=0 // pred_region
    _
  $region5: #{elu_feature_map.1} parent=0 // pred_fallthru
    _
  %v8 = vld [vmem:[%s0] sm:$0xff]
  %v9 = vld [vmem:[%s0 + $0x8] sm:$0xff]
  %v10 = vld [vmem:[%s0 + $0x10] sm:$0xff]
  %v11 = vld [vmem:[%s0 + $0x18] sm:$0xff]
  %vm12 = vcmp.gt.f32.partialorder %v8, 0.0
  %vm13 = vcmp.gt.f32.partialorder %v9, 0.0
  %vm14 = vcmp.gt.f32.partialorder %v10, 0.0
  %vm15 = vcmp.gt.f32.partialorder %v11, 0.0
  %v16 = vadd.f32 %v8, 1.0
  %v17 = vadd.f32 %v9, 1.0
  %v18 = vadd.f32 %v10, 1.0
  %v19 = vadd.f32 %v11, 1.0
  %v20 = vmin.f32 %v8, 0.0
  %v21 = vmin.f32 %v9, 0.0
  %v22 = vmin.f32 %v10, 0.0
  %v23 = vmin.f32 %v11, 0.0
  %v24 = vmul.f32 %v20, 1.442695
  %v25 = vpow.pop %v24
  %v26 = vmul.f32 %v21, 1.442695
  %v27 = vpow.pop %v26
  %v28 = vmul.f32 %v22, 1.442695
  %v29 = vpow.pop %v28
  %v30 = vmul.f32 %v23, 1.442695
  %v31 = vpow.pop %v30
  %v32 = vsel %vm12, %v16, %v25
  %v33 = vsel %vm13, %v17, %v27
  %v34 = vsel %vm14, %v18, %v29
  %v35 = vsel %vm15, %v19, %v31
  %36 = vst [vmem:[%s1] sm:$0xff] %v32
  %37 = vst [vmem:[%s1 + $0x8] sm:$0xff] %v33
  %38 = vst [vmem:[%s1 + $0x10] sm:$0xff] %v34
  %39 = vst [vmem:[%s1 + $0x18] sm:$0xff] %v35
  // Predicated region
  $region6: #{elu_feature_map.1} parent=0 // pred_check
    _
  $region7: #{elu_feature_map.1} parent=0 // pred_check_branch
    %41 = sbr.rel (0) target = $region9
  $region8: #{elu_feature_map.1} parent=0 // pred_region
    _
  $region9: #{elu_feature_map.1} parent=0 // pred_fallthru
    _
  // Predicated region
  $region10: #{elu_feature_map.1} parent=0 // pred_check
    _
  $region11: #{elu_feature_map.1} parent=0 // pred_check_branch
    %43 = sbr.rel (0) target = $region13
  $region12: #{elu_feature_map.1} parent=0 // pred_region
    _
  $region13: #{elu_feature_map.1} parent=0 // pred_fallthru
    _

</llo_original>
